<compile_context>
chip_gen: v7x
topology: tpu7x:2x2x1
jax: 0.10.0
libtpu: 0.0.40
codegen_flags: <defaults>
</compile_context>

<pallas_src>
import math

import jax
import jax.numpy as jnp
from jax.experimental import pallas as pl
from jax.experimental.pallas import tpu as pltpu


# ----------------------------- Pallas kernel ------------------------------- #
def _binrot_loss_kernel(pred_ref, bins_ref, res_ref, mask_ref, out_ref):
    # pred_ref : (8, N) f32, channel-GROUPED layout:
    #              rows 0-1 : logit-0 of bin head 1 / bin head 2
    #              rows 2-3 : logit-1 of bin head 1 / bin head 2
    #              rows 4-5 : sin prediction for head 1 / head 2
    #              rows 6-7 : cos prediction for head 1 / head 2
    # bins_ref : (2, N) target bins (0./1.), row 0 = bin1, row 1 = bin2
    # res_ref  : (2, N) target residual angles
    # mask_ref : (1, N) object mask (0./1.)
    # out_ref  : (1, 1) scalar loss
    pred = pred_ref[...].astype(jnp.float32)            # (8, N)
    bins = bins_ref[...].astype(jnp.float32)             # (2, N)
    res = res_ref[...].astype(jnp.float32)               # (2, N)
    m = mask_ref[...].astype(jnp.float32)                 # (1, N) -> broadcasts

    n = pred.shape[1]
    inv_n = jnp.float32(1.0 / n)                           # divide by original N

    l0 = pred[0:2, :]                                      # (2, N)
    l1 = pred[2:4, :]
    sin_p = pred[4:6, :]
    cos_p = pred[6:8, :]

    # --- 2-class cross entropy, sign trick + log1p, mean over ALL rows ---
    # CE_row = lse(l0, l1) - l_picked = softplus(l_other - l_picked)
    #        = softplus((l1 - l0) * (1 - 2*bin))   with mask-multiplied logits.
    # Masked rows give softplus(0) = log 2, matching
    # F.cross_entropy(output * mask, target, reduction='mean').
    delta = (l1 - l0) * m * (1.0 - 2.0 * bins)             # (2, N)
    ce = jnp.maximum(delta, 0.0) + jnp.log1p(jnp.exp(-jnp.abs(delta)))

    # --- smooth-L1 (beta=1) residual terms, restricted to rows with bin != 0 ---
    def smooth_l1(x, y):
        d = jnp.abs(x - y)
        return jnp.where(d < 1.0, 0.5 * d * d, d - 0.5)

    valid = (bins != 0.0).astype(jnp.float32)              # (2, N)
    res_elem = (smooth_l1(sin_p, jnp.sin(res))
                + smooth_l1(cos_p, jnp.cos(res))) * valid   # (2, N)

    # --- two lane-reduces total ---
    cnt = jnp.sum(valid, axis=1, keepdims=True)             # (2, 1)
    # When cnt == 0 every res_elem in that row is 0, so sum/max(cnt,1) == 0
    # and the reference's `if nonzero` branch is reproduced without a select.
    scale = 1.0 / jnp.maximum(cnt, 1.0)                      # exact, 2 divides
    per_row = jnp.sum(ce * inv_n + res_elem * scale,
                      axis=1, keepdims=True)                 # (2, 1)

    out_ref[...] = per_row[0:1, :] + per_row[1:2, :]


# ------------------------------ JAX wrapper -------------------------------- #
def binrot_loss(output_nchw, mask, ind, rotbin, rotres):
    """Equivalent of BinRotLoss.forward(output, mask, ind, rotbin, rotres)."""
    B, C, H, W = output_nchw.shape
    assert C == 8, "rotation head must have 8 channels"
    K = ind.shape[1]
    N = B * K

    # _tranpose_and_gather_feat, gather-before-transpose:
    #   (B, C, H, W) --free reshape--> (B, C, H*W) --gather K cols--> (B, C, K)
    # then permute channels into the grouped kernel layout and transpose the
    # tiny (8, B, K) result to lane-dense (8, N), column = b*K + k.
    feat = output_nchw.reshape(B, C, H * W)
    idx = jnp.broadcast_to(ind[:, None, :].astype(jnp.int32), (B, C, K))
    pred = jnp.take_along_axis(feat, idx, axis=2)                  # (B, 8, K)
    perm = jnp.array([0, 4, 1, 5, 2, 6, 3, 7], dtype=jnp.int32)
    pred_t = jnp.take(jnp.transpose(pred, (1, 0, 2)), perm, axis=0)
    pred_t = pred_t.reshape(C, N).astype(jnp.float32)              # (8, N)

    tb = jnp.transpose(rotbin.reshape(N, 2).astype(jnp.float32))   # (2, N)
    tr = jnp.transpose(rotres.reshape(N, 2).astype(jnp.float32))   # (2, N)
    m = mask.reshape(1, N).astype(jnp.float32)                     # (1, N)

    vmem = pl.BlockSpec(memory_space=pltpu.MemorySpace.VMEM)
    out = pl.pallas_call(
        _binrot_loss_kernel,
        out_shape=jax.ShapeDtypeStruct((1, 1), jnp.float32),
        in_specs=[vmem, vmem, vmem, vmem],
        out_specs=vmem,
    )(pred_t, tb, tr, m)
    return out[0, 0]


# ------------------------- pure-JAX reference ------------------------------ #
def _ref_loss(output_nchw, mask, ind, rotbin, rotres):
    B, C, H, W = output_nchw.shape
    K = ind.shape[1]
    feat = jnp.transpose(output_nchw, (0, 2, 3, 1)).reshape(B, H * W, C)
    idx = jnp.broadcast_to(ind[:, :, None].astype(jnp.int32), (B, K, C))
    pred = jnp.take_along_axis(feat, idx, axis=1).reshape(-1, 8)
    tb = rotbin.reshape(-1, 2)
    tr = rotres.reshape(-1, 2).astype(jnp.float32)
    m = mask.reshape(-1, 1).astype(jnp.float32)

    def ce(logits, tgt):
        logits = logits * m
        lse = jax.scipy.special.logsumexp(logits, axis=1)
        picked = jnp.take_along_axis(logits, tgt[:, None], axis=1)[:, 0]
        return jnp.mean(lse - picked)

    def sl1(x, y):
        d = jnp.abs(x - y)
        return jnp.where(d < 1.0, 0.5 * d * d, d - 0.5)

    def res_term(sin_pred, cos_pred, bin_col, res_col):
        v = (bin_col != 0).astype(jnp.float32)
        c = jnp.sum(v)
        s = jnp.sum(sl1(sin_pred, jnp.sin(res_col)) * v)
        co = jnp.sum(sl1(cos_pred, jnp.cos(res_col)) * v)
        return jnp.where(c > 0, (s + co) / jnp.maximum(c, 1.0), 0.0)

    lb1 = ce(pred[:, 0:2], tb[:, 0])
    lb2 = ce(pred[:, 4:6], tb[:, 1])
    r1 = res_term(pred[:, 2], pred[:, 3], tb[:, 0], tr[:, 0])
    r2 = res_term(pred[:, 6], pred[:, 7], tb[:, 1], tr[:, 1])
    return lb1 + lb2 + r1 + r2


# --------------------------------- main ------------------------------------ #
if __name__ == "__main__":
    B, C, H, W, K = 2, 8, 16, 16, 8

    key = jax.random.PRNGKey(0)
    k1, k2, k3, k4, k5 = jax.random.split(key, 5)

    output = jax.random.normal(k1, (B, C, H, W), dtype=jnp.float32)      # NCHW
    ind = jax.random.randint(k2, (B, K), 0, H * W, dtype=jnp.int32)      # (B, K)
    mask = jax.random.bernoulli(k3, 0.7, (B, K)).astype(jnp.float32)     # (B, K)
    rotbin = jax.random.randint(k4, (B, K, 2), 0, 2, dtype=jnp.int32)    # (B, K, 2)
    rotres = jax.random.uniform(k5, (B, K, 2), minval=-math.pi,
                                maxval=math.pi, dtype=jnp.float32)       # (B, K, 2)

    loss = binrot_loss(output, mask, ind, rotbin, rotres)
    jax.block_until_ready(loss)

    ref = _ref_loss(output, mask, ind, rotbin, rotres)
    assert jnp.allclose(loss, ref, rtol=1e-3, atol=1e-3), (loss, ref)

    print("KERNEL_OK")
</pallas_src>

<mosaic_0001>
module attributes {stable_mosaic.version = 11 : i64} {
  func.func @_binrot_loss_kernel(%arg0: memref<8x16xf32, #tpu.memory_space<vmem>>, %arg1: memref<2x16xf32, #tpu.memory_space<vmem>>, %arg2: memref<2x16xf32, #tpu.memory_space<vmem>>, %arg3: memref<1x16xf32, #tpu.memory_space<vmem>>, %arg4: memref<1x1xf32, #tpu.memory_space<vmem>>) attributes {dimension_semantics = [], scalar_prefetch = 0 : i64, scratch_operands = 0 : i64, tpu.core_type = #tpu.core_type<tc>} {
    %c0 = arith.constant 0 : index
    %c0_0 = arith.constant 0 : index
    %0 = vector.load %arg0[%c0, %c0_0] : memref<8x16xf32, #tpu.memory_space<vmem>>, vector<8x16xf32>
    %c0_1 = arith.constant 0 : index
    %c0_2 = arith.constant 0 : index
    %1 = vector.load %arg1[%c0_1, %c0_2] : memref<2x16xf32, #tpu.memory_space<vmem>>, vector<2x16xf32>
    %c0_3 = arith.constant 0 : index
    %c0_4 = arith.constant 0 : index
    %2 = vector.load %arg2[%c0_3, %c0_4] : memref<2x16xf32, #tpu.memory_space<vmem>>, vector<2x16xf32>
    %c0_5 = arith.constant 0 : index
    %c0_6 = arith.constant 0 : index
    %3 = vector.load %arg3[%c0_5, %c0_6] : memref<1x16xf32, #tpu.memory_space<vmem>>, vector<1x16xf32>
    %4 = vector.extract_strided_slice %0 {offsets = [0, 0], sizes = [2, 16], strides = [1, 1]} : vector<8x16xf32> to vector<2x16xf32>
    %5 = vector.extract_strided_slice %0 {offsets = [2, 0], sizes = [2, 16], strides = [1, 1]} : vector<8x16xf32> to vector<2x16xf32>
    %6 = vector.extract_strided_slice %0 {offsets = [4, 0], sizes = [2, 16], strides = [1, 1]} : vector<8x16xf32> to vector<2x16xf32>
    %7 = vector.extract_strided_slice %0 {offsets = [6, 0], sizes = [2, 16], strides = [1, 1]} : vector<8x16xf32> to vector<2x16xf32>
    %8 = arith.subf %5, %4 : vector<2x16xf32>
    %9 = vector.broadcast %3 : vector<1x16xf32> to vector<2x16xf32>
    %10 = arith.mulf %8, %9 : vector<2x16xf32>
    %cst = arith.constant 2.000000e+00 : f32
    %11 = vector.broadcast %cst : f32 to vector<2x16xf32>
    %12 = arith.mulf %11, %1 : vector<2x16xf32>
    %cst_7 = arith.constant 1.000000e+00 : f32
    %13 = vector.broadcast %cst_7 : f32 to vector<2x16xf32>
    %14 = arith.subf %13, %12 : vector<2x16xf32>
    %15 = arith.mulf %10, %14 : vector<2x16xf32>
    %cst_8 = arith.constant 0.000000e+00 : f32
    %16 = vector.broadcast %cst_8 : f32 to vector<2x16xf32>
    %17 = arith.maximumf %15, %16 : vector<2x16xf32>
    %18 = math.absf %15 : vector<2x16xf32>
    %cst_9 = arith.constant 0.000000e+00 : f32
    %19 = vector.broadcast %cst_9 : f32 to vector<2x16xf32>
    %20 = arith.subf %19, %18 : vector<2x16xf32>
    %21 = math.exp %20 : vector<2x16xf32>
    %22 = math.log1p %21 : vector<2x16xf32>
    %23 = arith.addf %17, %22 : vector<2x16xf32>
    %cst_10 = arith.constant 0.000000e+00 : f32
    %24 = vector.broadcast %cst_10 : f32 to vector<2x16xf32>
    %25 = arith.cmpf one, %1, %24 : vector<2x16xf32>
    %26 = arith.extui %25 : vector<2x16xi1> to vector<2x16xi32>
    %27 = arith.sitofp %26 : vector<2x16xi32> to vector<2x16xf32>
    %28 = math.sin %2 : vector<2x16xf32>
    %29 = arith.subf %6, %28 : vector<2x16xf32>
    %30 = math.absf %29 : vector<2x16xf32>
    %cst_11 = arith.constant 1.000000e+00 : f32
    %31 = vector.broadcast %cst_11 : f32 to vector<2x16xf32>
    %32 = arith.cmpf olt, %30, %31 : vector<2x16xf32>
    %cst_12 = arith.constant 5.000000e-01 : f32
    %33 = vector.broadcast %cst_12 : f32 to vector<2x16xf32>
    %34 = arith.mulf %33, %30 : vector<2x16xf32>
    %35 = arith.mulf %34, %30 : vector<2x16xf32>
    %cst_13 = arith.constant 5.000000e-01 : f32
    %36 = vector.broadcast %cst_13 : f32 to vector<2x16xf32>
    %37 = arith.subf %30, %36 : vector<2x16xf32>
    %38 = arith.select %32, %35, %37 : vector<2x16xi1>, vector<2x16xf32>
    %39 = math.cos %2 : vector<2x16xf32>
    %40 = arith.subf %7, %39 : vector<2x16xf32>
    %41 = math.absf %40 : vector<2x16xf32>
    %cst_14 = arith.constant 1.000000e+00 : f32
    %42 = vector.broadcast %cst_14 : f32 to vector<2x16xf32>
    %43 = arith.cmpf olt, %41, %42 : vector<2x16xf32>
    %cst_15 = arith.constant 5.000000e-01 : f32
    %44 = vector.broadcast %cst_15 : f32 to vector<2x16xf32>
    %45 = arith.mulf %44, %41 : vector<2x16xf32>
    %46 = arith.mulf %45, %41 : vector<2x16xf32>
    %cst_16 = arith.constant 5.000000e-01 : f32
    %47 = vector.broadcast %cst_16 : f32 to vector<2x16xf32>
    %48 = arith.subf %41, %47 : vector<2x16xf32>
    %49 = arith.select %43, %46, %48 : vector<2x16xi1>, vector<2x16xf32>
    %50 = arith.addf %38, %49 : vector<2x16xf32>
    %51 = arith.mulf %50, %27 : vector<2x16xf32>
    %cst_17 = arith.constant dense<0.000000e+00> : vector<2xf32>
    %52 = vector.multi_reduction <add>, %27, %cst_17 [1] : vector<2x16xf32> to vector<2xf32>
    %53 = vector.shape_cast %52 : vector<2xf32> to vector<2x1xf32>
    %cst_18 = arith.constant 1.000000e+00 : f32
    %54 = vector.broadcast %cst_18 : f32 to vector<2x1xf32>
    %55 = arith.maximumf %53, %54 : vector<2x1xf32>
    %cst_19 = arith.constant 1.000000e+00 : f32
    %56 = vector.broadcast %cst_19 : f32 to vector<2x1xf32>
    %57 = arith.divf %56, %55 : vector<2x1xf32>
    %cst_20 = arith.constant 6.250000e-02 : f32
    %58 = vector.broadcast %cst_20 : f32 to vector<2x16xf32>
    %59 = arith.mulf %23, %58 : vector<2x16xf32>
    %60 = vector.broadcast %57 : vector<2x1xf32> to vector<2x16xf32>
    %61 = arith.mulf %51, %60 : vector<2x16xf32>
    %62 = arith.addf %59, %61 : vector<2x16xf32>
    %cst_21 = arith.constant dense<0.000000e+00> : vector<2xf32>
    %63 = vector.multi_reduction <add>, %62, %cst_21 [1] : vector<2x16xf32> to vector<2xf32>
    %64 = vector.shape_cast %63 : vector<2xf32> to vector<2x1xf32>
    %65 = vector.extract_strided_slice %64 {offsets = [0, 0], sizes = [1, 1], strides = [1, 1]} : vector<2x1xf32> to vector<1x1xf32>
    %66 = vector.extract_strided_slice %64 {offsets = [1, 0], sizes = [1, 1], strides = [1, 1]} : vector<2x1xf32> to vector<1x1xf32>
    %67 = arith.addf %65, %66 : vector<1x1xf32>
    %c0_22 = arith.constant 0 : index
    %c0_23 = arith.constant 0 : index
    %68 = vector.load %arg4[%c0_22, %c0_23] : memref<1x1xf32, #tpu.memory_space<vmem>>, vector<1x1xf32>
    tpu.vector_store %arg4[%c0_22, %c0_23], %67 {strides = array<i32>} : memref<1x1xf32, #tpu.memory_space<vmem>>, vector<1x1xf32>,
    return
  }
}

</mosaic_0001>

<llo_original>
// kernel: tpu_custom_call.1
$region0: #{tpu_custom_call.1}
  #allocation0 [shape = 'u32[]', space=smem, size = 0x4, offset = 0x4, fixed_abs, tag = 'smem constant byte address 0x4 - core index']
  #allocation1 [shape = 'u32[144,128]{1,0:T(1,128)}', space=vmem, size = 0x12000, scoped, tag = 'internal scratch']
  %s0 = inlined_call_operand.hbm [shape: f32[8,16], index: 0, kind: input, shape index: {}]
  %s1 = inlined_call_operand.vmem [shape: f32[2,16], index: 1, kind: input, shape index: {}]
  %s2 = inlined_call_operand.vmem [shape: f32[2,16], index: 2, kind: input, shape index: {}]
  %s3 = inlined_call_operand.vmem [shape: f32[1,16], index: 3, kind: input, shape index: {}]
  %s4 = inlined_call_operand.hbm [shape: f32[1,1], index: 4, kind: output, shape index: {}]
  %s5 = sld [smem:[#allocation0]]
  $region30: #{tpu_custom_call.1} parent=0
    _
  %s7 = ssub.s32 1, %s5
  %s8 = scalar_select 0, %s7, %s5
  $region1: #{tpu_custom_call.1} parent=0
    #allocation2 [shape = 'u8[4096]{0}', space=vmem, size = 0x1000, scoped, tag = 'input window, operand 0, single buffered']
    #allocation3 [shape = 's32[1]{0}', space=sflag, size = 0x4, scoped, tag = 'scoped memory for tpu_custom_call.1']
    #allocation4 [shape = 's32[1]{0}', space=sflag, size = 0x4, scoped, tag = 'scoped memory for tpu_custom_call.1']
    #allocation5 [shape = 'u8[512]{0}', space=vmem, size = 0x400, scoped, tag = 'output window, operand 0, single buffered']
    %9 = vsyncpa [#allocation3], 0
    %10 = vsyncpa [#allocation4], 0
    // Predicated region
    $region2: #{tpu_custom_call.1} parent=1 // pred_check
      _
    $region3: #{tpu_custom_call.1} parent=1 // pred_check_branch
      %12 = sbr.rel (0) target = $region5
    $region4: #{tpu_custom_call.1} parent=1 // pred_region
      %s14 = ssub.s32 128, 128
      %15 = vsyncadd [#allocation3], %s14
      %s17 = sshll.u32 [#allocation2], 4
      %s18 = int_to_ptr.vmem [resolvable:$true] %s17
      %20 = dma.hbm_to_vmem [thread:$0]  %s0, 128, %s18, [#allocation3]
    $region5: #{tpu_custom_call.1} parent=1 // pred_fallthru
      _
    // Predicated region
    $region6: #{tpu_custom_call.1} parent=1 // pred_check
      _
    $region7: #{tpu_custom_call.1} parent=1 // pred_check_branch
      %22 = sbr.rel (0) target = $region9
    $region8: #{tpu_custom_call.1} parent=1 // pred_region
      _
    $region9: #{tpu_custom_call.1} parent=1 // pred_fallthru
      _
    // Predicated region
    $region10: #{tpu_custom_call.1} parent=1 // pred_check
      _
    $region11: #{tpu_custom_call.1} parent=1 // pred_check_branch
      %24 = sbr.rel (0) target = $region13
    $region12: #{tpu_custom_call.1} parent=1 // pred_region
      _
    $region13: #{tpu_custom_call.1} parent=1 // pred_fallthru
      _
    // Predicated region
    $region14: #{tpu_custom_call.1} parent=1 // pred_check
      _
    $region15: #{tpu_custom_call.1} parent=1 // pred_check_branch
      %26 = sbr.rel (0) target = $region17
    $region16: #{tpu_custom_call.1} parent=1 // pred_region
      _
    $region17: #{tpu_custom_call.1} parent=1 // pred_fallthru
      _
    // Predicated region
    $region18: #{tpu_custom_call.1} parent=1 // pred_check
      _
    $region19: #{tpu_custom_call.1} parent=1 // pred_check_branch
      %28 = sbr.rel (0) target = $region21
    $region20: #{tpu_custom_call.1} parent=1 // pred_region
      %29 = dma.done [#allocation3], 128
    $region21: #{tpu_custom_call.1} parent=1 // pred_fallthru
      _
    %v30 = vld [vmem:[#allocation2] sm:$0xff]
    %v31 = vld [vmem:[%s1] sm:$0x3]
    %v32 = vld [vmem:[%s2] sm:$0x3]
    %v33 = vld [vmem:[%s3] sm:$0x1]
    %v35 = vrot.slane %v30, 6
    %v37 = vsub.f32 %v30, %v35
    %v39 = vlaneseq
    %v40 = vshrl.u32 %v39, 7
    %v41 = vsub.s32 0, %v40
    %v42 = vrot.slane %v33, %v41
    %v44 = vmul.f32 %v37, %v42
    %v45 = vmul.f32 %v31, 2.0
    %v46 = vsub.f32 1.0, %v45
    %v48 = vrot.slane %v46, 6
    %v50 = vmul.f32 %v44, %v48
    %v51 = vmax.f32 %v50, 0.0
    %v52 = vand.u32 2147483647, %v50
    %v53 = vsub.f32 0.0, %v52
    %v54 = vmul.f32 %v53, 1.442695
    %v55 = vpow.pop %v54
    %v56 = vadd.f32 %v55, 1.0
    %v57 = vlog2.pop %v56
    %v58 = vmul.f32 %v57, 0.6931472
    %v59 = vmul.f32 -0.5, %v55
    %v60 = vadd.f32 %v59, 1.0
    %v61 = vmul.f32 %v60, %v55
    %v62 = vand.u32 2147483647, %v55
    %vm63 = vcmp.lt.f32.partialorder %v62, 0.0004427343
    %v64 = vsel %vm63, %v61, %v58
    %v65 = vadd.f32 %v51, %v64
    %vm66 = vcmp.ne.f32.partialorder %v31, 0.0
    %v67 = vsel %vm66, 1, 0
    %v68 = vcvt.s32.f32 %v67
    %v69 = vand.u32 2147483647, %v32
    %vm70 = vcmp.le.f32.partialorder %v69, 0.7853982
    %vm71 = vcmp.lt.s32.totalorder %v32, 0
    %v72 = vand.u32 %v32, 2139095040
    %v73 = vshrl.u32 %v72, 23
    %v74 = vsub.s32 %v73, 127
    %v75 = vand.u32 2147483647, %v32
    %v76 = vand.u32 %v75, 8388607
    %v77 = vor.u32 %v76, 8388608
    %v78 = vsub.s32 0, %v77
    %v79 = vadd.s32 %v74, 1
    %vm80 = vcmp.gt.s32.totalorder %v79, 0
    %v81 = vsel %vm80, %v79, 0
    %v82 = vshrl.u32 %v81, 5
    %v83 = vand.u32 %v81, 31
    %v84 = vsub.s32 32, %v83
    %v85 = vshrl.u32 683565275, %v84
    %v86 = vshll.u32 683565275, %v83
    %v87 = vshrl.u32 2475754826, %v84
    %v88 = vor.u32 %v86, %v87
    %v89 = vshll.u32 2475754826, %v83
    %v90 = vshrl.u32 2131351028, %v84
    %v91 = vor.u32 %v89, %v90
    %v92 = vshll.u32 2131351028, %v83
    %v93 = vshrl.u32 2102212464, %v84
    %v94 = vor.u32 %v92, %v93
    %v95 = vshll.u32 2102212464, %v83
    %v96 = vshrl.u32 920167782, %v84
    %v97 = vor.u32 %v95, %v96
    %v98 = vshll.u32 920167782, %v83
    %v99 = vshrl.u32 1326507024, %v84
    %v100 = vor.u32 %v98, %v99
    %vm101 = vcmp.lt.s32.totalorder %v82, 1
    %vm102 = vcmp.lt.s32.totalorder %v82, 2
    %vm103 = vcmp.lt.s32.totalorder %v82, 3
    %vm104 = vcmp.lt.s32.totalorder %v82, 4
    %v105 = vsel %vm101, %v85, %v88
    %v106 = vsel %vm104, %v94, 2102212464
    %v107 = vsel %vm103, %v91, %v106
    %v108 = vsel %vm102, %v105, %v107
    %v109 = vsel %vm101, %v88, %v91
    %v110 = vsel %vm104, %v97, 920167782
    %v111 = vsel %vm103, %v94, %v110
    %v112 = vsel %vm102, %v109, %v111
    %v113 = vsel %vm101, %v91, %v94
    %v114 = vsel %vm104, %v100, 1326507024
    %v115 = vsel %vm103, %v97, %v114
    %v116 = vsel %vm102, %v113, %v115
    %v117 = vshll.u32 %v77, 8
    %v118 = vmul.u32.u64.compose %v117, %v116
    %v119 = vextract.low.u32 %v118
    %v120 = vextract.high.u32 %v118
    %v121 = vmul.u32.u64.compose %v117, %v112
    %v122 = vextract.low.u32 %v121
    %v123 = vextract.high.u32 %v121
    %v124 = vmul.u32 %v117, %v108
    %v125 = vadd.s32 %v120, %v122
    %vm126 = vc.u32 %v120, %v122
    %v127 = vadd.s32 %v123, 1
    %v128 = vsel %vm126, %v127, %v123
    %v129 = vadd.s32 %v124, %v128
    %v130 = vadd.s32 %v129, 536870912
    %v131 = vshrl.u32 %v130, 30
    %v132 = vshll.u32 %v131, 30
    %v133 = vsub.s32 %v129, %v132
    %vm134 = vcmp.lt.s32.totalorder %v133, 0
    %v135 = vsub.s32 0, %v133
    %v136 = vsel %vm134, %v135, %v133
    %v137 = vclz %v136
    %v138 = vsub.s32 %v137, 2
    %vm139 = vcmp.gt.s32.totalorder 0, %v138
    %v140 = vsel %vm139, 0, %v138
    %v141 = vsub.s32 32, %v140
    %v142 = vshll.u32 %v133, %v140
    %v143 = vshrl.u32 %v125, %v141
    %v144 = vor.u32 %v142, %v143
    %v145 = vsub.s32 4294967266, %v140
    %v146 = vadd.s32 %v145, 127
    %v147 = vshll.u32 %v146, 23
    %v148 = vor.u32 4788187, %v147
    %v149 = vand.u32 2147483647, %v148
    %v151 = vcvt.s32.f32 %v144
    %v152 = vmul.f32 %v151, %v149
    %v153 = vxor.u32 %v152, 2147483648
    %v154 = vsel %vm71, %v153, %v152
    %v155 = vsub.s32 4, %v131
    %v156 = vsel %vm71, %v155, %v131
    %v157 = vsel %vm70, %v32, %v154
    %v158 = vsel %vm70, 0, %v156
    %v159 = vcosq.f32.pop %v157
    %v160 = vsinq.f32.pop %v157
    %vm161 = vweird.f32 %v32
    %v162 = vadd.s32 %v158, 3
    %v163 = vand.u32 %v162, 3
    %vm164 = vcmp.lt.s32.totalorder %v163, 2
    %vm165 = vcmp.eq.s32.totalorder %v163, 0
    %v166 = vxor.u32 %v160, 2147483648
    %v167 = vsel %vm165, %v159, %v166
    %vm168 = vcmp.eq.s32.totalorder %v163, 2
    %v169 = vxor.u32 %v159, 2147483648
    %v170 = vsel %vm168, %v169, %v160
    %v171 = vsel %vm164, %v167, %v170
    %v172 = vsel %vm161, nan, %v171
    %v174 = vrot.slane %v172, 4
    %v176 = vsub.f32 %v30, %v174
    %v177 = vand.u32 2147483647, %v176
    %vm178 = vcmp.lt.f32.partialorder %v177, 1.0
    %v179 = vmul.f32 %v177, 0.5
    %v180 = vmul.f32 %v179, %v177
    %v181 = vsub.f32 %v177, 0.5
    %v182 = vsel %vm178, %v180, %v181
    %v183 = vand.u32 2147483647, %v32
    %vm184 = vcmp.le.f32.partialorder %v183, 0.7853982
    %vm185 = vcmp.lt.s32.totalorder %v32, 0
    %v186 = vand.u32 %v32, 2139095040
    %v187 = vshrl.u32 %v186, 23
    %v188 = vsub.s32 %v187, 127
    %v189 = vand.u32 2147483647, %v32
    %v190 = vand.u32 %v189, 8388607
    %v191 = vor.u32 %v190, 8388608
    %v192 = vsub.s32 0, %v191
    %v193 = vadd.s32 %v188, 1
    %vm194 = vcmp.gt.s32.totalorder %v193, 0
    %v195 = vsel %vm194, %v193, 0
    %v196 = vshrl.u32 %v195, 5
    %v197 = vand.u32 %v195, 31
    %v198 = vsub.s32 32, %v197
    %v199 = vshrl.u32 683565275, %v198
    %v200 = vshll.u32 683565275, %v197
    %v201 = vshrl.u32 2475754826, %v198
    %v202 = vor.u32 %v200, %v201
    %v203 = vshll.u32 2475754826, %v197
    %v204 = vshrl.u32 2131351028, %v198
    %v205 = vor.u32 %v203, %v204
    %v206 = vshll.u32 2131351028, %v197
    %v207 = vshrl.u32 2102212464, %v198
    %v208 = vor.u32 %v206, %v207
    %v209 = vshll.u32 2102212464, %v197
    %v210 = vshrl.u32 920167782, %v198
    %v211 = vor.u32 %v209, %v210
    %v212 = vshll.u32 920167782, %v197
    %v213 = vshrl.u32 1326507024, %v198
    %v214 = vor.u32 %v212, %v213
    %vm215 = vcmp.lt.s32.totalorder %v196, 1
    %vm216 = vcmp.lt.s32.totalorder %v196, 2
    %vm217 = vcmp.lt.s32.totalorder %v196, 3
    %vm218 = vcmp.lt.s32.totalorder %v196, 4
    %v219 = vsel %vm215, %v199, %v202
    %v220 = vsel %vm218, %v208, 2102212464
    %v221 = vsel %vm217, %v205, %v220
    %v222 = vsel %vm216, %v219, %v221
    %v223 = vsel %vm215, %v202, %v205
    %v224 = vsel %vm218, %v211, 920167782
    %v225 = vsel %vm217, %v208, %v224
    %v226 = vsel %vm216, %v223, %v225
    %v227 = vsel %vm215, %v205, %v208
    %v228 = vsel %vm218, %v214, 1326507024
    %v229 = vsel %vm217, %v211, %v228
    %v230 = vsel %vm216, %v227, %v229
    %v231 = vshll.u32 %v191, 8
    %v232 = vmul.u32.u64.compose %v231, %v230
    %v233 = vextract.low.u32 %v232
    %v234 = vextract.high.u32 %v232
    %v235 = vmul.u32.u64.compose %v231, %v226
    %v236 = vextract.low.u32 %v235
    %v237 = vextract.high.u32 %v235
    %v238 = vmul.u32 %v231, %v222
    %v239 = vadd.s32 %v234, %v236
    %vm240 = vc.u32 %v234, %v236
    %v241 = vadd.s32 %v237, 1
    %v242 = vsel %vm240, %v241, %v237
    %v243 = vadd.s32 %v238, %v242
    %v244 = vadd.s32 %v243, 536870912
    %v245 = vshrl.u32 %v244, 30
    %v246 = vshll.u32 %v245, 30
    %v247 = vsub.s32 %v243, %v246
    %vm248 = vcmp.lt.s32.totalorder %v247, 0
    %v249 = vsub.s32 0, %v247
    %v250 = vsel %vm248, %v249, %v247
    %v251 = vclz %v250
    %v252 = vsub.s32 %v251, 2
    %vm253 = vcmp.gt.s32.totalorder 0, %v252
    %v254 = vsel %vm253, 0, %v252
    %v255 = vsub.s32 32, %v254
    %v256 = vshll.u32 %v247, %v254
    %v257 = vshrl.u32 %v239, %v255
    %v258 = vor.u32 %v256, %v257
    %v259 = vsub.s32 4294967266, %v254
    %v260 = vadd.s32 %v259, 127
    %v261 = vshll.u32 %v260, 23
    %v262 = vor.u32 4788187, %v261
    %v263 = vand.u32 2147483647, %v262
    %v265 = vcvt.s32.f32 %v258
    %v266 = vmul.f32 %v265, %v263
    %v267 = vxor.u32 %v266, 2147483648
    %v268 = vsel %vm185, %v267, %v266
    %v269 = vsub.s32 4, %v245
    %v270 = vsel %vm185, %v269, %v245
    %v271 = vsel %vm184, %v32, %v268
    %v272 = vsel %vm184, 0, %v270
    %v273 = vcosq.f32.pop %v271
    %v274 = vsinq.f32.pop %v271
    %vm275 = vweird.f32 %v32
    %v276 = vand.u32 %v272, 3
    %vm277 = vcmp.lt.s32.totalorder %v276, 2
    %vm278 = vcmp.eq.s32.totalorder %v276, 0
    %v279 = vxor.u32 %v274, 2147483648
    %v280 = vsel %vm278, %v273, %v279
    %vm281 = vcmp.eq.s32.totalorder %v276, 2
    %v282 = vxor.u32 %v273, 2147483648
    %v283 = vsel %vm281, %v282, %v274
    %v284 = vsel %vm277, %v280, %v283
    %v285 = vsel %vm275, nan, %v284
    %v287 = vrot.slane %v285, 2
    %v289 = vsub.f32 %v30, %v287
    %v290 = vand.u32 2147483647, %v289
    %vm291 = vcmp.lt.f32.partialorder %v290, 1.0
    %v292 = vmul.f32 %v290, 0.5
    %v293 = vmul.f32 %v292, %v290
    %v294 = vsub.f32 %v290, 0.5
    %v295 = vsel %vm291, %v293, %v294
    %v297 = vrot.slane %v295, 2
    %v299 = vadd.f32 %v182, %v297
    %v301 = vrot.slane %v68, 4
    %v303 = vmul.f32 %v299, %v301
    %vm304 = vcmask 123904
    %v305 = vsel %vm304, %v68, 0.0
    %306 = vadd.xlane.f32.xlu0 %v305
    %v307 = vpop.xlane.xlu0 %306
    %v308 = vmax.f32 %v307, 1.0
    %v309 = vrcp.pop %v308
    %v310 = vmul.f32 1.0, %v309
    %v311 = vmul.f32 %v65, 0.0625
    %v313 = vrot.slane %v310, 4
    %v315 = vmul.f32 %v303, %v313
    %v317 = vrot.slane %v315, 2
    %v319 = vadd.f32 %v311, %v317
    %vm320 = vcmask 125954
    %v321 = vsel %vm320, %v319, 0.0
    %322 = vadd.xlane.f32.xlu0 %v321
    %v323 = vpop.xlane.xlu0 %322
    %v325 = vrot.slane %v323, 1
    %v327 = vadd.f32 %v323, %v325
    %vm328 = vcmask 2050
    %329 = vst.msk [vmem:[#allocation5 - $0x2] sm:$0x4] %vm328, %v327
    // Predicated region
    $region22: #{tpu_custom_call.1} parent=1 // pred_check
      _
    $region23: #{tpu_custom_call.1} parent=1 // pred_check_branch
      %331 = sbr.rel (0) target = $region25
    $region24: #{tpu_custom_call.1} parent=1 // pred_region
      %s333 = ssub.s32 16, 16
      %334 = vsyncadd [#allocation4], %s333
      %s336 = sshll.u32 [#allocation5], 4
      %s337 = int_to_ptr.vmem [resolvable:$true] %s336
      %339 = dma.vmem_to_hbm [thread:$0]  %s337, 16, %s4, [#allocation4]
    $region25: #{tpu_custom_call.1} parent=1 // pred_fallthru
      _
    // Predicated region
    $region26: #{tpu_custom_call.1} parent=1 // pred_check
      _
    $region27: #{tpu_custom_call.1} parent=1 // pred_check_branch
      %341 = sbr.rel (0) target = $region29
    $region28: #{tpu_custom_call.1} parent=1 // pred_region
      %342 = dma.done [#allocation4], 16
    $region29: #{tpu_custom_call.1} parent=1 // pred_fallthru
      _
    %343 = vsyncpa [#allocation3], 1
    %344 = vsyncpa [#allocation4], 1

</llo_original>
